<compile_context>
chip_gen: v5e
topology: v5e:2x2
jax: 0.10.0
libtpu: 0.0.40
codegen_flags: <defaults>
</compile_context>

<pallas_src>
import jax
import jax.numpy as jnp
from jax.experimental import pallas as pl
from jax.experimental.pallas import tpu as pltpu


_LANE = 128                    # keep the feature axis a multiple of the lane width
_TARGET_TILE_BYTES = 4 << 20   # ~4 MiB input tile per grid step
_VMEM_LIMIT_BYTES = 48 << 20   # > v5e/v6e scoped defaults, < v7x 64 MiB physical


def _cross_pool_kernel(x_ref, coef_ref, out_ref):
    # x_ref: (BB, V, H, D); coef_ref: (3, D) = [lam/H, lam/V, 1-lam].
    x = x_ref[...].astype(jnp.float32)
    coef = coef_ref[...].astype(jnp.float32)
    lam_h = coef[0:1, :]                     # (1, D)  lam / H
    lam_v = coef[1:2, :]                     # (1, D)  lam / V
    olam = coef[2:3, :]                      # (1, D)  1 - lam

    # Mixed pooling; mean is folded into sum * precomputed scale.
    hor = lam_h * jnp.sum(x, axis=2) + olam * jnp.max(x, axis=2)   # (BB, V, D)
    ver = lam_v * jnp.sum(x, axis=1) + olam * jnp.max(x, axis=1)   # (BB, H, D)

    # Per-feature outer product: out[b, v, h, d] = hor[b, v, d] * ver[b, h, d].
    out_ref[...] = (hor[:, :, None, :] * ver[:, None, :, :]).astype(out_ref.dtype)


def _pick_batch_block(b, bytes_per_batch_elem):
    """Batch elements fused per grid step.

    Targets ~_TARGET_TILE_BYTES per input tile, but keeps >= 2 grid steps
    whenever b >= 2 so v7x's two TensorCores both get work.
    """
    if b <= 1:
        return 1
    bb = max(1, _TARGET_TILE_BYTES // max(int(bytes_per_batch_elem), 1))
    bb = min(bb, b, pl.cdiv(b, 2))
    return int(bb)


def cross_pool(matrix, lamtha):
    """matrix: (B, V, H, D), lamtha: (D,)  ->  (B, V, H, D) in matrix.dtype."""
    b, v, h, d = matrix.shape

    # Pad the feature axis to a multiple of 128 so every store stays lane-dense.
    d_pad = (-d) % _LANE
    if d_pad:
        matrix = jnp.pad(matrix, ((0, 0), (0, 0), (0, 0), (0, d_pad)))
        lamtha = jnp.pad(lamtha, ((0, d_pad),))
    dp = d + d_pad

    # Folded constants, shipped once as a tiny lane-dense (3, D) parameter.
    lam = lamtha.astype(jnp.float32)
    coef = jnp.stack([lam / h, lam / v, 1.0 - lam], axis=0)          # (3, D)

    bytes_per_batch_elem = v * h * dp * matrix.dtype.itemsize
    bb = _pick_batch_block(b, bytes_per_batch_elem)
    grid = (pl.cdiv(b, bb),)

    out = pl.pallas_call(
        _cross_pool_kernel,
        out_shape=jax.ShapeDtypeStruct((b, v, h, dp), matrix.dtype),
        grid=grid,
        in_specs=[
            pl.BlockSpec((bb, v, h, dp), lambda i: (i, 0, 0, 0)),
            pl.BlockSpec((3, dp), lambda i: (0, 0)),
        ],
        out_specs=pl.BlockSpec((bb, v, h, dp), lambda i: (i, 0, 0, 0)),
        compiler_params=pltpu.CompilerParams(
            dimension_semantics=("parallel",),   # batch tiles are independent
            vmem_limit_bytes=_VMEM_LIMIT_BYTES,
        ),
    )(matrix, coef)

    if d_pad:
        out = out[..., :d]
    return out


def cross_pool_reference(matrix, lamtha):
    """Pure-JAX reference mirroring the PyTorch forward."""
    hor = lamtha * jnp.mean(matrix, axis=2) + (1.0 - lamtha) * jnp.max(matrix, axis=2)
    ver = lamtha * jnp.mean(matrix, axis=1) + (1.0 - lamtha) * jnp.max(matrix, axis=1)
    return hor[:, :, None, :] * ver[:, None, :, :]


if __name__ == "__main__":
    # Small shapes; hidden_size = 128 keeps the feature (last) dim lane-dense.
    B, V, H, D = 2, 8, 16, 128

    key = jax.random.PRNGKey(0)
    k_x, k_l = jax.random.split(key)
    matrix = jax.random.normal(k_x, (B, V, H, D), jnp.float32)
    lamtha = jax.random.uniform(k_l, (D,), jnp.float32)   # torch.rand(hidden_size)

    out = jax.block_until_ready(cross_pool(matrix, lamtha))
    ref = cross_pool_reference(matrix, lamtha)

    assert out.shape == (B, V, H, D)
    assert out.dtype == matrix.dtype
    assert bool(jnp.all(jnp.isfinite(out)))
    assert bool(jnp.allclose(out, ref, atol=1e-5, rtol=1e-5))
    print("KERNEL_OK")
</pallas_src>

<mosaic_0001>
module attributes {stable_mosaic.version = 11 : i64} {
  func.func @_cross_pool_kernel(%arg0: i32, %arg1: memref<1x8x16x128xf32, #tpu.memory_space<vmem>>, %arg2: memref<3x128xf32, #tpu.memory_space<vmem>>, %arg3: memref<1x8x16x128xf32, #tpu.memory_space<vmem>>) attributes {dimension_semantics = [#tpu.dimension_semantics<parallel>], iteration_bounds = array<i64: 2>, scalar_prefetch = 0 : i64, scratch_operands = 0 : i64, tpu.core_type = #tpu.core_type<tc>, window_params = [{transform_indices = @transform_0, window_bounds = array<i64: 1, 8, 16, 128>}, {pipeline_mode = #tpu.pipeline_mode<synchronous>, transform_indices = @transform_1, window_bounds = array<i64: 3, 128>}, {transform_indices = @transform_2, window_bounds = array<i64: 1, 8, 16, 128>}]} {
    %c0 = arith.constant 0 : index
    %c0_0 = arith.constant 0 : index
    %c0_1 = arith.constant 0 : index
    %c0_2 = arith.constant 0 : index
    %0 = vector.load %arg1[%c0, %c0_0, %c0_1, %c0_2] : memref<1x8x16x128xf32, #tpu.memory_space<vmem>>, vector<1x8x16x128xf32>
    %c0_3 = arith.constant 0 : index
    %c0_4 = arith.constant 0 : index
    %1 = vector.load %arg2[%c0_3, %c0_4] : memref<3x128xf32, #tpu.memory_space<vmem>>, vector<3x128xf32>
    %2 = vector.extract_strided_slice %1 {offsets = [0, 0], sizes = [1, 128], strides = [1, 1]} : vector<3x128xf32> to vector<1x128xf32>
    %3 = vector.extract_strided_slice %1 {offsets = [1, 0], sizes = [1, 128], strides = [1, 1]} : vector<3x128xf32> to vector<1x128xf32>
    %4 = vector.extract_strided_slice %1 {offsets = [2, 0], sizes = [1, 128], strides = [1, 1]} : vector<3x128xf32> to vector<1x128xf32>
    %cst = arith.constant dense<0.000000e+00> : vector<1x8x128xf32>
    %5 = vector.multi_reduction <add>, %0, %cst [2] : vector<1x8x16x128xf32> to vector<1x8x128xf32>
    %6 = vector.shape_cast %2 : vector<1x128xf32> to vector<1x1x128xf32>
    %7 = vector.broadcast %6 : vector<1x1x128xf32> to vector<1x8x128xf32>
    %8 = arith.mulf %7, %5 : vector<1x8x128xf32>
    %cst_5 = arith.constant dense<0xFF800000> : vector<1x8x128xf32>
    %9 = vector.multi_reduction <maximumf>, %0, %cst_5 [2] : vector<1x8x16x128xf32> to vector<1x8x128xf32>
    %10 = vector.shape_cast %4 : vector<1x128xf32> to vector<1x1x128xf32>
    %11 = vector.broadcast %10 : vector<1x1x128xf32> to vector<1x8x128xf32>
    %12 = arith.mulf %11, %9 : vector<1x8x128xf32>
    %13 = arith.addf %8, %12 : vector<1x8x128xf32>
    %cst_6 = arith.constant dense<0.000000e+00> : vector<1x16x128xf32>
    %14 = vector.multi_reduction <add>, %0, %cst_6 [1] : vector<1x8x16x128xf32> to vector<1x16x128xf32>
    %15 = vector.shape_cast %3 : vector<1x128xf32> to vector<1x1x128xf32>
    %16 = vector.broadcast %15 : vector<1x1x128xf32> to vector<1x16x128xf32>
    %17 = arith.mulf %16, %14 : vector<1x16x128xf32>
    %cst_7 = arith.constant dense<0xFF800000> : vector<1x16x128xf32>
    %18 = vector.multi_reduction <maximumf>, %0, %cst_7 [1] : vector<1x8x16x128xf32> to vector<1x16x128xf32>
    %19 = vector.shape_cast %4 : vector<1x128xf32> to vector<1x1x128xf32>
    %20 = vector.broadcast %19 : vector<1x1x128xf32> to vector<1x16x128xf32>
    %21 = arith.mulf %20, %18 : vector<1x16x128xf32>
    %22 = arith.addf %17, %21 : vector<1x16x128xf32>
    %23 = vector.shape_cast %13 : vector<1x8x128xf32> to vector<1x8x1x128xf32>
    %24 = vector.shape_cast %22 : vector<1x16x128xf32> to vector<1x1x16x128xf32>
    %25 = vector.broadcast %23 : vector<1x8x1x128xf32> to vector<1x8x16x128xf32>
    %26 = vector.broadcast %24 : vector<1x1x16x128xf32> to vector<1x8x16x128xf32>
    %27 = arith.mulf %25, %26 : vector<1x8x16x128xf32>
    %c0_8 = arith.constant 0 : index
    %c0_9 = arith.constant 0 : index
    %c0_10 = arith.constant 0 : index
    %c0_11 = arith.constant 0 : index
    %28 = vector.load %arg3[%c0_8, %c0_9, %c0_10, %c0_11] : memref<1x8x16x128xf32, #tpu.memory_space<vmem>>, vector<1x8x16x128xf32>
    tpu.vector_store %arg3[%c0_8, %c0_9, %c0_10, %c0_11], %27 {strides = array<i32>} : memref<1x8x16x128xf32, #tpu.memory_space<vmem>>, vector<1x8x16x128xf32>,
    return
  }
  func.func @transform_0(%arg0: i32) -> (i32, i32, i32, i32) {
    %c0_i32 = arith.constant 0 : i32
    %c0_i32_0 = arith.constant 0 : i32
    %c0_i32_1 = arith.constant 0 : i32
    %c0_i32_2 = arith.constant 0 : i32
    return %arg0, %c0_i32, %c0_i32_0, %c0_i32_1 : i32, i32, i32, i32
  }
  func.func @transform_1(%arg0: i32) -> (i32, i32) {
    %c0_i32 = arith.constant 0 : i32
    %c0_i32_0 = arith.constant 0 : i32
    %c0_i32_1 = arith.constant 0 : i32
    return %c0_i32, %c0_i32_0 : i32, i32
  }
  func.func @transform_2(%arg0: i32) -> (i32, i32, i32, i32) {
    %c0_i32 = arith.constant 0 : i32
    %c0_i32_0 = arith.constant 0 : i32
    %c0_i32_1 = arith.constant 0 : i32
    %c0_i32_2 = arith.constant 0 : i32
    return %arg0, %c0_i32, %c0_i32_0, %c0_i32_1 : i32, i32, i32, i32
  }
}

</mosaic_0001>

<llo_original>
// kernel: tpu_custom_call.1
$region0: #{tpu_custom_call.1}
  #allocation0 [shape = 'u32[]', space=smem, size = 0x4, offset = 0x4, fixed_abs, tag = 'smem constant byte address 0x4 - core index']
  #allocation1 [shape = 'u32[72,128]{1,0:T(1,128)}', space=vmem, size = 0x9000, scoped, tag = 'internal scratch']
  %s0 = inlined_call_operand.hbm [shape: f32[2,8,16,128], index: 0, kind: input, shape index: {}]
  %s1 = inlined_call_operand.hbm [shape: f32[3,128], index: 1, kind: input, shape index: {}]
  %s2 = inlined_call_operand.hbm [shape: f32[2,8,16,128], index: 2, kind: output, shape index: {}]
  %s3 = sld [smem:[#allocation0]]
  $region49: #{tpu_custom_call.1} parent=0
    _
  %s5 = ssub.s32 1, %s3
  %s6 = scalar_select 0, %s5, %s3
  $region1: #{tpu_custom_call.1} parent=0
    #allocation2 [shape = 'u8[131072]{0}', space=vmem, size = 0x20000, scoped, tag = 'input window, operand 0']
    #allocation3 [shape = 's32[2]{0}', space=sflag, size = 0x8, scoped, tag = 'scoped memory for tpu_custom_call.1']
    #allocation4 [shape = 's32[2]{0}', space=sflag, size = 0x8, scoped, tag = 'scoped memory for tpu_custom_call.1']
    #allocation5 [shape = 'u8[2048]{0}', space=vmem, size = 0x800, scoped, tag = 'input window, operand 1, single buffered']
    #allocation6 [shape = 's32[1]{0}', space=sflag, size = 0x4, scoped, tag = 'scoped memory for tpu_custom_call.1']
    #allocation7 [shape = 'u8[131072]{0}', space=vmem, size = 0x20000, scoped, tag = 'output window, operand 0']
    %7 = vsyncpa [#allocation3], 0
    %s8 = scalar_lea.sflag [#allocation3], 1
    %9 = vsyncpa %s8, 0
    %10 = vsyncpa [#allocation6], 0
    %11 = vsyncpa [#allocation4], 0
    %s12 = scalar_lea.sflag [#allocation4], 1
    %13 = vsyncpa %s12, 0
    loop: start=0, step=1, limit=4
    $region2: #{tpu_custom_call.1} parent=1 // loop_pre_header
      _
    $region3: #{tpu_custom_call.1} parent=1 // loop_header
      %s15 = sphi 0, %s19
      %p16 = scmp.ge.s32.totalorder %s15, 4
      %s25 = sphi 0, %s27
      %s28 = sphi 0, %s25
      %s29 = sphi 0, %s28
      %s45 = sphi 0, %s29
      %s49 = sphi 0, %s49
      %s51 = sphi 0, %s49
      %s52 = sphi 0, %s51
      %s66 = sphi 0, %s52
      %s72 = sphi 0, %s74
      %s75 = sphi 0, %s72
      %s76 = sphi 0, %s75
      %s92 = sphi 0, %s76
    $region4: #{tpu_custom_call.1} parent=1 // loop_header_branch
      %18 = sbr.rel (%p16) target = $region8
    $region5: #{tpu_custom_call.1} parent=1 // loop_body
      %s20 = ssub.s32 %s15, 1
      %s21 = ssub.s32 %s15, 2
      %s22 = sadd.s32 %s15, 1
      %s23 = ssub.s32 %s15, %s22
      %p24 = scmp.eq.s32.totalorder %s23, 0
      %s26 = sadd.s32 %s25, 1
      %s27 = scalar_select %p24, %s25, %s26
      %p30 = pneg %p24
      %p31 = scmp.eq.s32.totalorder %s15, 1
      %p32 = por %p30, %p31
      %p33 = scmp.ne.s32.totalorder %s25, %s28
      %p34 = scmp.eq.s32.totalorder %s15, 0
      %p35 = por %p33, %p34
      %p36 = scmp.ne.s32.totalorder %s25, %s28
      %p37 = scmp.eq.s32.totalorder %s20, 1
      %p38 = por %p36, %p37
      %p39 = scmp.ne.s32.totalorder %s28, %s29
      %p40 = scmp.eq.s32.totalorder %s20, 0
      %p41 = por %p39, %p40
      %p42 = scmp.ne.s32.totalorder %s28, %s29
      %p43 = scmp.eq.s32.totalorder %s21, 1
      %p44 = por %p42, %p43
      %p46 = scmp.ne.s32.totalorder %s29, %s45
      %p47 = scmp.eq.s32.totalorder %s21, 0
      %p48 = por %p46, %p47
      %s50 = sadd.s32 %s49, 1
      %p53 = scmp.eq.s32.totalorder %s15, 1
      %p54 = scmp.ne.s32.totalorder %s49, %s51
      %p55 = scmp.eq.s32.totalorder %s15, 0
      %p56 = por %p54, %p55
      %p57 = scmp.ne.s32.totalorder %s49, %s51
      %p58 = scmp.eq.s32.totalorder %s20, 1
      %p59 = por %p57, %p58
      %p60 = scmp.ne.s32.totalorder %s51, %s52
      %p61 = scmp.eq.s32.totalorder %s20, 0
      %p62 = por %p60, %p61
      %p63 = scmp.ne.s32.totalorder %s51, %s52
      %p64 = scmp.eq.s32.totalorder %s21, 1
      %p65 = por %p63, %p64
      %p67 = scmp.ne.s32.totalorder %s52, %s66
      %p68 = scmp.eq.s32.totalorder %s21, 0
      %p69 = por %p67, %p68
      %s70 = ssub.s32 %s15, %s22
      %p71 = scmp.eq.s32.totalorder %s70, 0
      %s73 = sadd.s32 %s72, 1
      %s74 = scalar_select %p71, %s72, %s73
      %p77 = pneg %p71
      %p78 = scmp.eq.s32.totalorder %s15, 1
      %p79 = por %p77, %p78
      %p80 = scmp.ne.s32.totalorder %s72, %s75
      %p81 = scmp.eq.s32.totalorder %s15, 0
      %p82 = por %p80, %p81
      %p83 = scmp.ne.s32.totalorder %s72, %s75
      %p84 = scmp.eq.s32.totalorder %s20, 1
      %p85 = por %p83, %p84
      %p86 = scmp.ne.s32.totalorder %s75, %s76
      %p87 = scmp.eq.s32.totalorder %s20, 0
      %p88 = por %p86, %p87
      %p89 = scmp.ne.s32.totalorder %s75, %s76
      %p90 = scmp.eq.s32.totalorder %s21, 1
      %p91 = por %p89, %p90
      %p93 = scmp.ne.s32.totalorder %s76, %s92
      %p94 = scmp.eq.s32.totalorder %s21, 0
      %p95 = por %p93, %p94
      %p96 = scmp.le.s32.totalorder 1, %s15
      %p97 = scmp.lt.s32.totalorder %s15, 3
      %p98 = pnand %p96, %p97
      %p99 = pneg %p98
      // Predicated region
      $region9: #{tpu_custom_call.1} parent=5 // pred_check
        _
      $region10: #{tpu_custom_call.1} parent=5 // pred_check_branch
        %101 = sbr.rel (%p98) target = $region12
      $region11: #{tpu_custom_call.1} parent=5 // pred_region
        %s102 = ssub.s32 %s15, 1
        // Predicated region
        $region13: #{tpu_custom_call.1} parent=11 // pred_check
          %p103 = pneg %p62
        $region14: #{tpu_custom_call.1} parent=11 // pred_check_branch
          %105 = sbr.rel (%p103) target = $region16
        $region15: #{tpu_custom_call.1} parent=11 // pred_region
          %107 = vsyncadd [#allocation6], 0
          %s109 = sshll.u32 %s1, 4
          %s110 = int_to_ptr.hbm [resolvable:$true] %s109
          %s111 = sshll.u32 [#allocation5], 4
          %s112 = int_to_ptr.vmem [resolvable:$true] %s111
          %114 = dma.hbm_to_vmem [thread:$0]  %s110, 64, %s112, [#allocation6]
        $region16: #{tpu_custom_call.1} parent=11 // pred_fallthru
          _
      $region12: #{tpu_custom_call.1} parent=5 // pred_fallthru
        _
      %p115 = scmp.lt.s32.totalorder %s15, 2
      // Predicated region
      $region17: #{tpu_custom_call.1} parent=5 // pred_check
        %p116 = pneg %p115
      $region18: #{tpu_custom_call.1} parent=5 // pred_check_branch
        %118 = sbr.rel (%p116) target = $region20
      $region19: #{tpu_custom_call.1} parent=5 // pred_region
        // Predicated region
        $region21: #{tpu_custom_call.1} parent=19 // pred_check
          %p119 = pneg %p35
        $region22: #{tpu_custom_call.1} parent=19 // pred_check_branch
          %121 = sbr.rel (%p119) target = $region24
        $region23: #{tpu_custom_call.1} parent=19 // pred_region
          %s122 = sand.u32 %s25, 1
          %s123 = scalar_lea.sflag [#allocation3], %s122
          %s124 = sand.u32 %s25, 1
          %s125 = smul.addr %s124, 128
          %s126 = scalar_lea.vmem [#allocation2], %s125
          %128 = vsyncadd %s123, 0
          %s129 = smul.addr %s15, 16
          %s130 = smul.addr %s129, 8
          %s131 = scalar_lea.hbm %s0, %s130
          %s132 = sshll.u32 %s131, 4
          %s133 = int_to_ptr.hbm [resolvable:$true] %s132
          %s134 = sshll.u32 %s126, 4
          %s135 = int_to_ptr.vmem [resolvable:$true] %s134
          %140 = dma.hbm_to_vmem [thread:$0]  %s133, 2048, %s135, %s123, 128, 128, 8
        $region24: #{tpu_custom_call.1} parent=19 // pred_fallthru
          _
      $region20: #{tpu_custom_call.1} parent=5 // pred_fallthru
        _
      %p141 = scmp.le.s32.totalorder 1, %s15
      %p142 = scmp.lt.s32.totalorder %s15, 3
      %p143 = pnand %p141, %p142
      %p144 = pneg %p143
      // Predicated region
      $region25: #{tpu_custom_call.1} parent=5 // pred_check
        _
      $region26: #{tpu_custom_call.1} parent=5 // pred_check_branch
        %146 = sbr.rel (%p143) target = $region28
      $region27: #{tpu_custom_call.1} parent=5 // pred_region
        %s147 = ssub.s32 %s15, 1
        %s148 = sand.u32 %s28, 1
        %s149 = scalar_lea.sflag [#allocation3], %s148
        %s150 = sand.u32 %s28, 1
        %s151 = smul.addr %s150, 128
        %s152 = scalar_lea.vmem [#allocation2], %s151
        // Predicated region
        $region29: #{tpu_custom_call.1} parent=27 // pred_check
          %p153 = pneg %p41
        $region30: #{tpu_custom_call.1} parent=27 // pred_check_branch
          %155 = sbr.rel (%p153) target = $region32
        $region31: #{tpu_custom_call.1} parent=27 // pred_region
          %157 = dma.done %s149, 2048
        $region32: #{tpu_custom_call.1} parent=27 // pred_fallthru
          _
        // Predicated region
        $region33: #{tpu_custom_call.1} parent=27 // pred_check
          %p158 = pneg %p62
        $region34: #{tpu_custom_call.1} parent=27 // pred_check_branch
          %160 = sbr.rel (%p158) target = $region36
        $region35: #{tpu_custom_call.1} parent=27 // pred_region
          %162 = dma.done [#allocation6], 64
        $region36: #{tpu_custom_call.1} parent=27 // pred_fallthru
          _
        %s163 = sand.u32 %s28, 1
        %s164 = scalar_lea.sflag [#allocation3], %s163
        %s165 = sand.u32 %s28, 1
        %s166 = smul.addr %s165, 128
        %s167 = scalar_lea.vmem [#allocation2], %s166
        %p168 = pneg %p41
        %p169 = pneg %p38
        %p170 = pneg %p62
        %p171 = pneg %p59
        %p172 = pneg %p88
        %p173 = pneg %p85
        %s174 = sand.u32 %s75, 1
        %s175 = scalar_lea.sflag [#allocation4], %s174
        %s176 = sand.u32 %s75, 1
        %s177 = smul.addr %s176, 128
        %s178 = scalar_lea.vmem [#allocation7], %s177
        %v179 = vld [vmem:[%s152] sm:$0xff]
        %v180 = vld [vmem:[%s152 + $0x8] sm:$0xff]
        %v181 = vld [vmem:[%s152 + $0x10] sm:$0xff]
        %v182 = vld [vmem:[%s152 + $0x18] sm:$0xff]
        %v183 = vld [vmem:[%s152 + $0x20] sm:$0xff]
        %v184 = vld [vmem:[%s152 + $0x28] sm:$0xff]
        %v185 = vld [vmem:[%s152 + $0x30] sm:$0xff]
        %v186 = vld [vmem:[%s152 + $0x38] sm:$0xff]
        %v187 = vld [vmem:[%s152 + $0x40] sm:$0xff]
        %v188 = vld [vmem:[%s152 + $0x48] sm:$0xff]
        %v189 = vld [vmem:[%s152 + $0x50] sm:$0xff]
        %v190 = vld [vmem:[%s152 + $0x58] sm:$0xff]
        %v191 = vld [vmem:[%s152 + $0x60] sm:$0xff]
        %v192 = vld [vmem:[%s152 + $0x68] sm:$0xff]
        %v193 = vld [vmem:[%s152 + $0x70] sm:$0xff]
        %v194 = vld [vmem:[%s152 + $0x78] sm:$0xff]
        %v195 = vld [vmem:[#allocation5] sm:$0x7]
        %v196 = vadd.f32 %v179, %v180
        %v197 = vrot.slane %v196, 4
        %v198 = vadd.f32 %v196, %v197
        %v199 = vrot.slane %v198, 2
        %v200 = vadd.f32 %v198, %v199
        %v201 = vrot.slane %v200, 1
        %v202 = vadd.f32 %v200, %v201
        %v203 = vadd.f32 %v181, %v182
        %v204 = vrot.slane %v203, 4
        %v205 = vadd.f32 %v203, %v204
        %v206 = vrot.slane %v205, 2
        %v207 = vadd.f32 %v205, %v206
        %v208 = vrot.slane %v207, 1
        %v209 = vadd.f32 %v207, %v208
        %v210 = vadd.f32 %v183, %v184
        %v211 = vrot.slane %v210, 4
        %v212 = vadd.f32 %v210, %v211
        %v213 = vrot.slane %v212, 2
        %v214 = vadd.f32 %v212, %v213
        %v215 = vrot.slane %v214, 1
        %v216 = vadd.f32 %v214, %v215
        %v217 = vadd.f32 %v185, %v186
        %v218 = vrot.slane %v217, 4
        %v219 = vadd.f32 %v217, %v218
        %v220 = vrot.slane %v219, 2
        %v221 = vadd.f32 %v219, %v220
        %v222 = vrot.slane %v221, 1
        %v223 = vadd.f32 %v221, %v222
        %v224 = vadd.f32 %v187, %v188
        %v225 = vrot.slane %v224, 4
        %v226 = vadd.f32 %v224, %v225
        %v227 = vrot.slane %v226, 2
        %v228 = vadd.f32 %v226, %v227
        %v229 = vrot.slane %v228, 1
        %v230 = vadd.f32 %v228, %v229
        %v231 = vadd.f32 %v189, %v190
        %v232 = vrot.slane %v231, 4
        %v233 = vadd.f32 %v231, %v232
        %v234 = vrot.slane %v233, 2
        %v235 = vadd.f32 %v233, %v234
        %v236 = vrot.slane %v235, 1
        %v237 = vadd.f32 %v235, %v236
        %v238 = vadd.f32 %v191, %v192
        %v239 = vrot.slane %v238, 4
        %v240 = vadd.f32 %v238, %v239
        %v241 = vrot.slane %v240, 2
        %v242 = vadd.f32 %v240, %v241
        %v243 = vrot.slane %v242, 1
        %v244 = vadd.f32 %v242, %v243
        %v245 = vadd.f32 %v193, %v194
        %v246 = vrot.slane %v245, 4
        %v247 = vadd.f32 %v245, %v246
        %v248 = vrot.slane %v247, 2
        %v249 = vadd.f32 %v247, %v248
        %v250 = vrot.slane %v249, 1
        %v251 = vadd.f32 %v249, %v250
        %v252 = vperm.slane %v195, 0
        %vm261 = vcmask 1041409
        %v262 = vsel %vm261, %v209, %v202
        %vm263 = vcmask 1042434
        %v264 = vsel %vm263, %v216, %v262
        %vm265 = vcmask 1043459
        %v266 = vsel %vm265, %v223, %v264
        %vm267 = vcmask 1044484
        %v268 = vsel %vm267, %v230, %v266
        %vm269 = vcmask 1045509
        %v270 = vsel %vm269, %v237, %v268
        %vm271 = vcmask 1046534
        %v272 = vsel %vm271, %v244, %v270
        %vm273 = vcmask 1047559
        %v274 = vsel %vm273, %v251, %v272
        %v276 = vmul.f32 %v252, %v274
        %v277 = vmax.f32 %v179, %v180
        %v278 = vrot.slane %v277, 4
        %v279 = vmax.f32 %v277, %v278
        %v280 = vrot.slane %v279, 2
        %v281 = vmax.f32 %v279, %v280
        %v282 = vrot.slane %v281, 1
        %v283 = vmax.f32 %v281, %v282
        %v284 = vmax.f32 %v181, %v182
        %v285 = vrot.slane %v284, 4
        %v286 = vmax.f32 %v284, %v285
        %v287 = vrot.slane %v286, 2
        %v288 = vmax.f32 %v286, %v287
        %v289 = vrot.slane %v288, 1
        %v290 = vmax.f32 %v288, %v289
        %v291 = vmax.f32 %v183, %v184
        %v292 = vrot.slane %v291, 4
        %v293 = vmax.f32 %v291, %v292
        %v294 = vrot.slane %v293, 2
        %v295 = vmax.f32 %v293, %v294
        %v296 = vrot.slane %v295, 1
        %v297 = vmax.f32 %v295, %v296
        %v298 = vmax.f32 %v185, %v186
        %v299 = vrot.slane %v298, 4
        %v300 = vmax.f32 %v298, %v299
        %v301 = vrot.slane %v300, 2
        %v302 = vmax.f32 %v300, %v301
        %v303 = vrot.slane %v302, 1
        %v304 = vmax.f32 %v302, %v303
        %v305 = vmax.f32 %v187, %v188
        %v306 = vrot.slane %v305, 4
        %v307 = vmax.f32 %v305, %v306
        %v308 = vrot.slane %v307, 2
        %v309 = vmax.f32 %v307, %v308
        %v310 = vrot.slane %v309, 1
        %v311 = vmax.f32 %v309, %v310
        %v312 = vmax.f32 %v189, %v190
        %v313 = vrot.slane %v312, 4
        %v314 = vmax.f32 %v312, %v313
        %v315 = vrot.slane %v314, 2
        %v316 = vmax.f32 %v314, %v315
        %v317 = vrot.slane %v316, 1
        %v318 = vmax.f32 %v316, %v317
        %v319 = vmax.f32 %v191, %v192
        %v320 = vrot.slane %v319, 4
        %v321 = vmax.f32 %v319, %v320
        %v322 = vrot.slane %v321, 2
        %v323 = vmax.f32 %v321, %v322
        %v324 = vrot.slane %v323, 1
        %v325 = vmax.f32 %v323, %v324
        %v326 = vmax.f32 %v193, %v194
        %v327 = vrot.slane %v326, 4
        %v328 = vmax.f32 %v326, %v327
        %v329 = vrot.slane %v328, 2
        %v330 = vmax.f32 %v328, %v329
        %v331 = vrot.slane %v330, 1
        %v332 = vmax.f32 %v330, %v331
        %v333 = vperm.slane %v195, 2
        %v342 = vsel %vm261, %v290, %v283
        %v343 = vsel %vm263, %v297, %v342
        %v344 = vsel %vm265, %v304, %v343
        %v345 = vsel %vm267, %v311, %v344
        %v346 = vsel %vm269, %v318, %v345
        %v347 = vsel %vm271, %v325, %v346
        %v348 = vsel %vm273, %v332, %v347
        %v350 = vmul.f32 %v333, %v348
        %v351 = vadd.f32 %v276, %v350
        %v352 = vadd.f32 %v179, %v181
        %v353 = vadd.f32 %v352, %v183
        %v354 = vadd.f32 %v353, %v185
        %v355 = vadd.f32 %v354, %v187
        %v356 = vadd.f32 %v355, %v189
        %v357 = vadd.f32 %v356, %v191
        %v358 = vadd.f32 %v357, %v193
        %v359 = vadd.f32 %v180, %v182
        %v360 = vadd.f32 %v359, %v184
        %v361 = vadd.f32 %v360, %v186
        %v362 = vadd.f32 %v361, %v188
        %v363 = vadd.f32 %v362, %v190
        %v364 = vadd.f32 %v363, %v192
        %v365 = vadd.f32 %v364, %v194
        %v366 = vperm.slane %v195, 1
        %v367 = vmul.f32 %v366, %v358
        %v368 = vmul.f32 %v366, %v365
        %v369 = vmax.f32 %v179, %v183
        %v370 = vmax.f32 %v181, %v185
        %v371 = vmax.f32 %v369, %v187
        %v372 = vmax.f32 %v370, %v189
        %v373 = vmax.f32 %v371, %v191
        %v374 = vmax.f32 %v372, %v193
        %v375 = vmax.f32 %v373, %v374
        %v376 = vmax.f32 %v180, %v184
        %v377 = vmax.f32 %v182, %v186
        %v378 = vmax.f32 %v376, %v188
        %v379 = vmax.f32 %v377, %v190
        %v380 = vmax.f32 %v378, %v192
        %v381 = vmax.f32 %v379, %v194
        %v382 = vmax.f32 %v380, %v381
        %v383 = vmul.f32 %v333, %v375
        %v384 = vmul.f32 %v333, %v382
        %v385 = vadd.f32 %v367, %v383
        %v386 = vadd.f32 %v368, %v384
        %v388 = vrot.slane %v351, 1
        %v389 = vrot.slane %v351, 2
        %v390 = vrot.slane %v351, 3
        %v391 = vrot.slane %v351, 4
        %v392 = vrot.slane %v351, 5
        %v393 = vrot.slane %v351, 6
        %v394 = vrot.slane %v351, 7
        %v395 = vperm.slane %v351, 0
        %v396 = vperm.slane %v388, 0
        %v397 = vperm.slane %v389, 0
        %v398 = vperm.slane %v390, 0
        %v399 = vperm.slane %v391, 0
        %v400 = vperm.slane %v392, 0
        %v401 = vperm.slane %v393, 0
        %v402 = vperm.slane %v394, 0
        %v411 = vmul.f32 %v395, %v385
        %v412 = vmul.f32 %v395, %v386
        %v413 = vmul.f32 %v396, %v385
        %v414 = vmul.f32 %v396, %v386
        %v415 = vmul.f32 %v397, %v385
        %v416 = vmul.f32 %v397, %v386
        %v417 = vmul.f32 %v398, %v385
        %v418 = vmul.f32 %v398, %v386
        %v419 = vmul.f32 %v399, %v385
        %v420 = vmul.f32 %v399, %v386
        %v421 = vmul.f32 %v400, %v385
        %v422 = vmul.f32 %v400, %v386
        %v423 = vmul.f32 %v401, %v385
        %v424 = vmul.f32 %v401, %v386
        %v425 = vmul.f32 %v402, %v385
        %v426 = vmul.f32 %v402, %v386
        %427 = vst [vmem:[%s178] sm:$0xff] %v411
        %428 = vst [vmem:[%s178 + $0x8] sm:$0xff] %v412
        %429 = vst [vmem:[%s178 + $0x10] sm:$0xff] %v413
        %430 = vst [vmem:[%s178 + $0x18] sm:$0xff] %v414
        %431 = vst [vmem:[%s178 + $0x20] sm:$0xff] %v415
        %432 = vst [vmem:[%s178 + $0x28] sm:$0xff] %v416
        %433 = vst [vmem:[%s178 + $0x30] sm:$0xff] %v417
        %434 = vst [vmem:[%s178 + $0x38] sm:$0xff] %v418
        %435 = vst [vmem:[%s178 + $0x40] sm:$0xff] %v419
        %436 = vst [vmem:[%s178 + $0x48] sm:$0xff] %v420
        %437 = vst [vmem:[%s178 + $0x50] sm:$0xff] %v421
        %438 = vst [vmem:[%s178 + $0x58] sm:$0xff] %v422
        %439 = vst [vmem:[%s178 + $0x60] sm:$0xff] %v423
        %440 = vst [vmem:[%s178 + $0x68] sm:$0xff] %v424
        %441 = vst [vmem:[%s178 + $0x70] sm:$0xff] %v425
        %442 = vst [vmem:[%s178 + $0x78] sm:$0xff] %v426
        %s443 = sand.u32 %s75, 1
        %s444 = scalar_lea.sflag [#allocation4], %s443
        %s445 = sand.u32 %s75, 1
        %s446 = smul.addr %s445, 128
        %s447 = scalar_lea.vmem [#allocation7], %s446
        // Predicated region
        $region37: #{tpu_custom_call.1} parent=27 // pred_check
          %p448 = pneg %p85
        $region38: #{tpu_custom_call.1} parent=27 // pred_check_branch
          %450 = sbr.rel (%p448) target = $region40
        $region39: #{tpu_custom_call.1} parent=27 // pred_region
          %452 = vsyncadd %s444, 0
          %s453 = smul.addr %s20, 16
          %s454 = smul.addr %s453, 8
          %s455 = scalar_lea.hbm %s2, %s454
          %s456 = sshll.u32 %s447, 4
          %s457 = int_to_ptr.vmem [resolvable:$true] %s456
          %s458 = sshll.u32 %s455, 4
          %s459 = int_to_ptr.hbm [resolvable:$true] %s458
          %464 = dma.vmem_to_hbm [thread:$0]  %s457, 2048, %s459, %s444, 128, 128, 8
        $region40: #{tpu_custom_call.1} parent=27 // pred_fallthru
          _
      $region28: #{tpu_custom_call.1} parent=5 // pred_fallthru
        _
      %p465 = scmp.le.s32.totalorder 2, %s15
      // Predicated region
      $region41: #{tpu_custom_call.1} parent=5 // pred_check
        %p466 = pneg %p465
      $region42: #{tpu_custom_call.1} parent=5 // pred_check_branch
        %468 = sbr.rel (%p466) target = $region44
      $region43: #{tpu_custom_call.1} parent=5 // pred_region
        %s469 = ssub.s32 %s15, 2
        // Predicated region
        $region45: #{tpu_custom_call.1} parent=43 // pred_check
          %p470 = pneg %p91
        $region46: #{tpu_custom_call.1} parent=43 // pred_check_branch
          %472 = sbr.rel (%p470) target = $region48
        $region47: #{tpu_custom_call.1} parent=43 // pred_region
          %s473 = sand.u32 %s76, 1
          %s474 = scalar_lea.sflag [#allocation4], %s473
          %s475 = sand.u32 %s76, 1
          %s476 = smul.addr %s475, 128
          %s477 = scalar_lea.vmem [#allocation7], %s476
          %479 = dma.done %s474, 2048
        $region48: #{tpu_custom_call.1} parent=43 // pred_fallthru
          _
      $region44: #{tpu_custom_call.1} parent=5 // pred_fallthru
        _
    $region6: #{tpu_custom_call.1} parent=1 // loop_footer
      %s19 = sadd.s32 1, %s15
    $region7: #{tpu_custom_call.1} parent=1 // loop_footer_branch
      %14 = sbr.rel target = $region3
    $region8: #{tpu_custom_call.1} parent=1 // loop_exit
      _
    %480 = vsyncpa [#allocation3], 1
    %s481 = scalar_lea.sflag [#allocation3], 1
    %482 = vsyncpa %s481, 1
    %483 = vsyncpa [#allocation6], 1
    %484 = vsyncpa [#allocation4], 1
    %s485 = scalar_lea.sflag [#allocation4], 1
    %486 = vsyncpa %s485, 1

</llo_original>
